<compile_context>
chip_gen: v6e
topology: v6e:2x2x1
jax: 0.10.0
libtpu: 0.0.40
codegen_flags: <defaults>
</compile_context>

<pallas_src>
import jax
import jax.numpy as jnp
from jax.experimental import pallas as pl
from jax.experimental.pallas import tpu as pltpu

NUM_MID = 72  # fixed in the PyTorch module


def _round_up(v, m):
    return -(-v // m) * m


def _tpu_generation():
    try:
        kind = jax.devices()[0].device_kind.lower()
    except Exception:
        return "unknown"
    if "v5 lite" in kind or "v5e" in kind or "v5lite" in kind:
        return "v5e"
    if "v6" in kind:
        return "v6e"
    if "v7" in kind:
        return "v7x"
    return "unknown"


def _vmem_capacity_bytes(gen):
    try:
        return int(pltpu.get_tpu_info().vmem_capacity_bytes)
    except Exception:
        pass
    # Conservative fallbacks: 128 MiB on v5e/v6e, 64 MiB otherwise (v7x-safe).
    return (128 << 20) if gen in ("v5e", "v6e") else (64 << 20)


def _block_vmem_bytes(nb, C, HW, dtype):
    """VMEM footprint of one (nb, C, HW) block, including (sublane, lane) tile padding."""
    itemsize = jnp.dtype(dtype).itemsize
    sublane_pack = 8 * max(1, 4 // itemsize)   # 8 rows f32, 16 bf16, 32 int8
    return nb * _round_up(C, sublane_pack) * _round_up(HW, 128) * itemsize


def _choose_nb(N, per_sample_vmem, gen, block_budget):
    """Per-step batch size: generation-aware block target, clamped to the VMEM budget."""
    target = {"v5e": 4 << 20, "v6e": 8 << 20, "v7x": 10 << 20}.get(gen, 8 << 20)
    # Double-buffered input + double-buffered output = 4x block must fit the budget.
    target = min(target, block_budget // 4)
    nb = int(max(1, target // max(1, per_sample_vmem)))
    nb = min(nb, N)
    # v7x megacore only: keep >= 2 grid steps per TensorCore (overlap on both cores),
    # but never shrink a block below ~1 MiB just to manufacture parallelism.
    if gen == "v7x" and N > 1:
        nb_cap = -(-N // 4)
        if nb_cap * per_sample_vmem >= (1 << 20):
            nb = min(nb, nb_cap)
    # Snap to a nearby divisor of N when one exists (avoids the boundary-masked
    # partial last block at negligible block-size cost).
    if N % nb:
        for d in range(nb, max(1, (3 * nb) // 4) - 1, -1):
            if N % d == 0:
                nb = d
                break
    return max(1, int(nb))


def _se_kernel(x_ref, w1_ref, b1_ref, w2_ref, b2_ref, o_ref):
    # x_ref block: (Nb, C, HW) in the input dtype (f32 or bf16).
    x = x_ref[...]
    xf = x.astype(jnp.float32)
    # Global average pool over the fused spatial axis (== mean(3).mean(2)).
    y = jnp.mean(xf, axis=-1)                                                    # (Nb, C)
    # Reduce 1x1 conv + ReLU.
    h = jnp.dot(y, w1_ref[...], preferred_element_type=jnp.float32) + b1_ref[...]  # (Nb, M)
    h = jnp.maximum(h, 0.0)
    # Expand 1x1 conv + hard-sigmoid (relu6(z + 3) / 6).
    z = jnp.dot(h, w2_ref[...], preferred_element_type=jnp.float32) + b2_ref[...]  # (Nb, C)
    s = jnp.clip(z + 3.0, 0.0, 6.0) * (1.0 / 6.0)                                  # (Nb, C)
    # Scale input channels (broadcast over spatial lanes, no transposes).
    o_ref[...] = (xf * s[:, :, None]).astype(o_ref.dtype)                          # (Nb, C, HW)


def se_module(x_nchw, w_reduce, b_reduce, w_expand, b_expand, block_batch=None):
    """x_nchw: (N, C, H, W), f32 or bf16. Weights follow PyTorch Conv2d 1x1 shapes:
       w_reduce (M, C, 1, 1), b_reduce (M,), w_expand (C, M, 1, 1), b_expand (C,)."""
    N, C, H, W = x_nchw.shape
    M = w_reduce.shape[0]
    HW = H * W

    # Keep the activation dtype (bf16 streams as bf16 -> half the HBM bytes).
    x = x_nchw.reshape(N, C, HW)
    w1 = w_reduce.reshape(M, C).T.astype(jnp.float32)   # (C, M)
    b1 = b_reduce.reshape(1, M).astype(jnp.float32)
    w2 = w_expand.reshape(C, M).T.astype(jnp.float32)   # (M, C)
    b2 = b_expand.reshape(1, C).astype(jnp.float32)

    gen = _tpu_generation()
    vmem_cap = _vmem_capacity_bytes(gen)
    block_budget = max(4 << 20, vmem_cap - (16 << 20))   # for the 4x double-buffered blocks

    per_sample_vmem = _block_vmem_bytes(1, C, HW, x.dtype)
    if block_batch is None:
        nb = _choose_nb(N, per_sample_vmem, gen, block_budget)
    else:
        nb = max(1, int(min(block_batch, N)))

    grid = (pl.cdiv(N, nb),)   # no host-side padding; last partial block is boundary-masked

    block_vmem = _block_vmem_bytes(nb, C, HW, x.dtype)
    weight_vmem = 2 * 4 * (
        _round_up(C, 8) * _round_up(M, 128)
        + _round_up(1, 8) * _round_up(M, 128)
        + _round_up(M, 8) * _round_up(C, 128)
        + _round_up(1, 8) * _round_up(C, 128)
    )
    # 2x input + 2x output buffers (default double buffering) + weights + margin,
    # clamped to physical VMEM minus 8 MiB headroom (64 MiB on v7x).
    vmem_limit = int(min(vmem_cap - (8 << 20),
                         max(32 << 20, 4 * block_vmem + weight_vmem + (4 << 20))))

    out = pl.pallas_call(
        _se_kernel,
        out_shape=jax.ShapeDtypeStruct((N, C, HW), x.dtype),
        grid_spec=pltpu.PrefetchScalarGridSpec(
            num_scalar_prefetch=0,
            grid=grid,
            in_specs=[
                pl.BlockSpec((nb, C, HW), lambda i: (i, 0, 0)),
                pl.BlockSpec((C, M), lambda i: (0, 0)),
                pl.BlockSpec((1, M), lambda i: (0, 0)),
                pl.BlockSpec((M, C), lambda i: (0, 0)),
                pl.BlockSpec((1, C), lambda i: (0, 0)),
            ],
            out_specs=pl.BlockSpec((nb, C, HW), lambda i: (i, 0, 0)),
        ),
        compiler_params=pltpu.CompilerParams(
            dimension_semantics=("parallel",),
            vmem_limit_bytes=vmem_limit,
        ),
    )(x, w1, b1, w2, b2)

    return out.reshape(N, C, H, W)


def _reference(x, w1, b1, w2, b2):
    # Pure-JAX reference for correctness check.
    N, C, H, W = x.shape
    M = w1.shape[0]
    xf = x.astype(jnp.float32)
    y = xf.mean(axis=3).mean(axis=2)                                    # (N, C)
    h = jnp.maximum(y @ w1.reshape(M, C).T.astype(jnp.float32) + b1, 0.0)
    z = h @ w2.reshape(C, M).T.astype(jnp.float32) + b2
    s = jnp.clip(z + 3.0, 0.0, 6.0) / 6.0
    return (xf * s.reshape(N, C, 1, 1)).astype(x.dtype)


if __name__ == "__main__":
    key = jax.random.PRNGKey(0)
    kx, k1, kb1, k2, kb2, kx2 = jax.random.split(key, 6)

    N, C, H, W = 2, 4, 16, 16
    M = NUM_MID

    x = jax.random.normal(kx, (N, C, H, W), dtype=jnp.float32)
    # Deterministic synthetic parameters (Conv2d 1x1 shapes).
    w_reduce = jax.random.normal(k1, (M, C, 1, 1), dtype=jnp.float32) * 0.1
    b_reduce = jax.random.normal(kb1, (M,), dtype=jnp.float32) * 0.1
    w_expand = jax.random.normal(k2, (C, M, 1, 1), dtype=jnp.float32) * 0.1
    b_expand = jax.random.normal(kb2, (C,), dtype=jnp.float32) * 0.1

    out = se_module(x, w_reduce, b_reduce, w_expand, b_expand)
    out = jax.block_until_ready(out)
    ref = _reference(x, w_reduce, b_reduce, w_expand, b_expand)
    assert out.shape == (N, C, H, W)
    assert jnp.allclose(out, ref, atol=1e-5, rtol=1e-5), "mismatch vs reference"

    # Exercise the no-padding path with a non-dividing batch: 5 samples, 2 per block
    # -> 3 grid steps, last block half-valid (boundary-masked stores).
    N2 = 5
    x2 = jax.random.normal(kx2, (N2, C, H, W), dtype=jnp.float32)
    out2 = jax.block_until_ready(
        se_module(x2, w_reduce, b_reduce, w_expand, b_expand, block_batch=2))
    ref2 = _reference(x2, w_reduce, b_reduce, w_expand, b_expand)
    assert out2.shape == (N2, C, H, W)
    assert jnp.allclose(out2, ref2, atol=1e-5, rtol=1e-5), "mismatch vs reference (partial block)"

    print("KERNEL_OK")
</pallas_src>

<mosaic_0001>
module attributes {stable_mosaic.version = 11 : i64} {
  func.func @_se_kernel(%arg0: i32, %arg1: memref<2x4x256xf32, #tpu.memory_space<vmem>>, %arg2: memref<4x72xf32, #tpu.memory_space<vmem>>, %arg3: memref<1x72xf32, #tpu.memory_space<vmem>>, %arg4: memref<72x4xf32, #tpu.memory_space<vmem>>, %arg5: memref<1x4xf32, #tpu.memory_space<vmem>>, %arg6: memref<2x4x256xf32, #tpu.memory_space<vmem>>) attributes {dimension_semantics = [#tpu.dimension_semantics<parallel>], iteration_bounds = array<i64: 1>, scalar_prefetch = 0 : i64, scratch_operands = 0 : i64, tpu.core_type = #tpu.core_type<tc>, window_params = [{transform_indices = @transform_0, window_bounds = array<i64: 2, 4, 256>}, {pipeline_mode = #tpu.pipeline_mode<synchronous>, transform_indices = @transform_1, window_bounds = array<i64: 4, 72>}, {pipeline_mode = #tpu.pipeline_mode<synchronous>, transform_indices = @transform_2, window_bounds = array<i64: 1, 72>}, {pipeline_mode = #tpu.pipeline_mode<synchronous>, transform_indices = @transform_3, window_bounds = array<i64: 72, 4>}, {pipeline_mode = #tpu.pipeline_mode<synchronous>, transform_indices = @transform_4, window_bounds = array<i64: 1, 4>}, {transform_indices = @transform_5, window_bounds = array<i64: 2, 4, 256>}]} {
    %c0 = arith.constant 0 : index
    %c0_0 = arith.constant 0 : index
    %c0_1 = arith.constant 0 : index
    %0 = vector.load %arg1[%c0, %c0_0, %c0_1] : memref<2x4x256xf32, #tpu.memory_space<vmem>>, vector<2x4x256xf32>
    %cst = arith.constant dense<0.000000e+00> : vector<2x4xf32>
    %1 = vector.multi_reduction <add>, %0, %cst [2] : vector<2x4x256xf32> to vector<2x4xf32>
    %cst_2 = arith.constant 2.560000e+02 : f32
    %2 = vector.broadcast %cst_2 : f32 to vector<2x4xf32>
    %3 = arith.divf %1, %2 : vector<2x4xf32>
    %c0_3 = arith.constant 0 : index
    %c0_4 = arith.constant 0 : index
    %4 = vector.load %arg2[%c0_3, %c0_4] : memref<4x72xf32, #tpu.memory_space<vmem>>, vector<4x72xf32>
    %cst_5 = arith.constant dense<0.000000e+00> : vector<2x72xf32>
    %5 = tpu.matmul %3, %4, %cst_5 {dimension_numbers = #tpu.dot_dimension_numbers<[1], [0], [0], [1], [0, 0, 1, 1], [], []>} : vector<2x4xf32>, vector<4x72xf32>, vector<2x72xf32> -> vector<2x72xf32>
    %c0_6 = arith.constant 0 : index
    %c0_7 = arith.constant 0 : index
    %6 = vector.load %arg3[%c0_6, %c0_7] : memref<1x72xf32, #tpu.memory_space<vmem>>, vector<1x72xf32>
    %7 = vector.broadcast %6 : vector<1x72xf32> to vector<2x72xf32>
    %8 = arith.addf %5, %7 : vector<2x72xf32>
    %cst_8 = arith.constant 0.000000e+00 : f32
    %9 = vector.broadcast %cst_8 : f32 to vector<2x72xf32>
    %10 = arith.maximumf %8, %9 : vector<2x72xf32>
    %c0_9 = arith.constant 0 : index
    %c0_10 = arith.constant 0 : index
    %11 = vector.load %arg4[%c0_9, %c0_10] : memref<72x4xf32, #tpu.memory_space<vmem>>, vector<72x4xf32>
    %cst_11 = arith.constant dense<0.000000e+00> : vector<2x4xf32>
    %12 = tpu.matmul %10, %11, %cst_11 {dimension_numbers = #tpu.dot_dimension_numbers<[1], [0], [0], [1], [0, 0, 1, 1], [], []>} : vector<2x72xf32>, vector<72x4xf32>, vector<2x4xf32> -> vector<2x4xf32>
    %c0_12 = arith.constant 0 : index
    %c0_13 = arith.constant 0 : index
    %13 = vector.load %arg5[%c0_12, %c0_13] : memref<1x4xf32, #tpu.memory_space<vmem>>, vector<1x4xf32>
    %14 = vector.broadcast %13 : vector<1x4xf32> to vector<2x4xf32>
    %15 = arith.addf %12, %14 : vector<2x4xf32>
    %cst_14 = arith.constant 3.000000e+00 : f32
    %16 = vector.broadcast %cst_14 : f32 to vector<2x4xf32>
    %17 = arith.addf %15, %16 : vector<2x4xf32>
    %cst_15 = arith.constant 0.000000e+00 : f32
    %cst_16 = arith.constant 6.000000e+00 : f32
    %18 = vector.broadcast %cst_15 : f32 to vector<2x4xf32>
    %19 = arith.maximumf %18, %17 : vector<2x4xf32>
    %20 = vector.broadcast %cst_16 : f32 to vector<2x4xf32>
    %21 = arith.minimumf %20, %19 : vector<2x4xf32>
    %cst_17 = arith.constant 0.166666672 : f32
    %22 = vector.broadcast %cst_17 : f32 to vector<2x4xf32>
    %23 = arith.mulf %21, %22 : vector<2x4xf32>
    %24 = vector.shape_cast %23 : vector<2x4xf32> to vector<2x4x1xf32>
    %25 = vector.broadcast %24 : vector<2x4x1xf32> to vector<2x4x256xf32>
    %26 = arith.mulf %0, %25 : vector<2x4x256xf32>
    %c0_18 = arith.constant 0 : index
    %c0_19 = arith.constant 0 : index
    %c0_20 = arith.constant 0 : index
    %27 = vector.load %arg6[%c0_18, %c0_19, %c0_20] : memref<2x4x256xf32, #tpu.memory_space<vmem>>, vector<2x4x256xf32>
    tpu.vector_store %arg6[%c0_18, %c0_19, %c0_20], %26 {strides = array<i32>} : memref<2x4x256xf32, #tpu.memory_space<vmem>>, vector<2x4x256xf32>,
    return
  }
  func.func @transform_0(%arg0: i32) -> (i32, i32, i32) {
    %c0_i32 = arith.constant 0 : i32
    %c0_i32_0 = arith.constant 0 : i32
    %c0_i32_1 = arith.constant 0 : i32
    return %arg0, %c0_i32, %c0_i32_0 : i32, i32, i32
  }
  func.func @transform_1(%arg0: i32) -> (i32, i32) {
    %c0_i32 = arith.constant 0 : i32
    %c0_i32_0 = arith.constant 0 : i32
    %c0_i32_1 = arith.constant 0 : i32
    return %c0_i32, %c0_i32_0 : i32, i32
  }
  func.func @transform_2(%arg0: i32) -> (i32, i32) {
    %c0_i32 = arith.constant 0 : i32
    %c0_i32_0 = arith.constant 0 : i32
    %c0_i32_1 = arith.constant 0 : i32
    return %c0_i32, %c0_i32_0 : i32, i32
  }
  func.func @transform_3(%arg0: i32) -> (i32, i32) {
    %c0_i32 = arith.constant 0 : i32
    %c0_i32_0 = arith.constant 0 : i32
    %c0_i32_1 = arith.constant 0 : i32
    return %c0_i32, %c0_i32_0 : i32, i32
  }
  func.func @transform_4(%arg0: i32) -> (i32, i32) {
    %c0_i32 = arith.constant 0 : i32
    %c0_i32_0 = arith.constant 0 : i32
    %c0_i32_1 = arith.constant 0 : i32
    return %c0_i32, %c0_i32_0 : i32, i32
  }
  func.func @transform_5(%arg0: i32) -> (i32, i32, i32) {
    %c0_i32 = arith.constant 0 : i32
    %c0_i32_0 = arith.constant 0 : i32
    %c0_i32_1 = arith.constant 0 : i32
    return %arg0, %c0_i32, %c0_i32_0 : i32, i32, i32
  }
}

</mosaic_0001>

<llo_original>
// kernel: tpu_custom_call.1
$region0: #{tpu_custom_call.1}
  #allocation0 [shape = 'u32[]', space=smem, size = 0x4, offset = 0x4, fixed_abs, tag = 'smem constant byte address 0x4 - core index']
  #allocation1 [shape = 'u32[144,128]{1,0:T(1,128)}', space=vmem, size = 0x12000, scoped, tag = 'internal scratch']
  %s0 = inlined_call_operand.vmem [shape: f32[2,4,256], index: 0, kind: input, shape index: {}]
  %s1 = inlined_call_operand.vmem [shape: f32[4,72], index: 1, kind: input, shape index: {}]
  %s2 = inlined_call_operand.vmem [shape: f32[1,72], index: 2, kind: input, shape index: {}]
  %s3 = inlined_call_operand.vmem [shape: f32[72,4], index: 3, kind: input, shape index: {}]
  %s4 = inlined_call_operand.vmem [shape: f32[1,4], index: 4, kind: input, shape index: {}]
  %s5 = inlined_call_operand.hbm [shape: f32[2,4,256], index: 5, kind: output, shape index: {}]
  %s6 = sld [smem:[#allocation0]]
  $region30: #{tpu_custom_call.1} parent=0
    _
  %s8 = ssub.s32 1, %s6
  %s9 = scalar_select 0, %s8, %s6
  $region1: #{tpu_custom_call.1} parent=0
    #allocation2 [shape = 'u8[8192]{0}', space=vmem, size = 0x2000, scoped, tag = 'output window, operand 0, single buffered']
    #allocation3 [shape = 's32[1]{0}', space=sflag, size = 0x4, scoped, tag = 'scoped memory for tpu_custom_call.1']
    %10 = vsyncpa [#allocation3], 0
    // Predicated region
    $region2: #{tpu_custom_call.1} parent=1 // pred_check
      _
    $region3: #{tpu_custom_call.1} parent=1 // pred_check_branch
      %12 = sbr.rel (0) target = $region5
    $region4: #{tpu_custom_call.1} parent=1 // pred_region
      _
    $region5: #{tpu_custom_call.1} parent=1 // pred_fallthru
      _
    // Predicated region
    $region6: #{tpu_custom_call.1} parent=1 // pred_check
      _
    $region7: #{tpu_custom_call.1} parent=1 // pred_check_branch
      %14 = sbr.rel (0) target = $region9
    $region8: #{tpu_custom_call.1} parent=1 // pred_region
      _
    $region9: #{tpu_custom_call.1} parent=1 // pred_fallthru
      _
    // Predicated region
    $region10: #{tpu_custom_call.1} parent=1 // pred_check
      _
    $region11: #{tpu_custom_call.1} parent=1 // pred_check_branch
      %16 = sbr.rel (0) target = $region13
    $region12: #{tpu_custom_call.1} parent=1 // pred_region
      _
    $region13: #{tpu_custom_call.1} parent=1 // pred_fallthru
      _
    // Predicated region
    $region14: #{tpu_custom_call.1} parent=1 // pred_check
      _
    $region15: #{tpu_custom_call.1} parent=1 // pred_check_branch
      %18 = sbr.rel (0) target = $region17
    $region16: #{tpu_custom_call.1} parent=1 // pred_region
      _
    $region17: #{tpu_custom_call.1} parent=1 // pred_fallthru
      _
    // Predicated region
    $region18: #{tpu_custom_call.1} parent=1 // pred_check
      _
    $region19: #{tpu_custom_call.1} parent=1 // pred_check_branch
      %20 = sbr.rel (0) target = $region21
    $region20: #{tpu_custom_call.1} parent=1 // pred_region
      _
    $region21: #{tpu_custom_call.1} parent=1 // pred_fallthru
      _
    %v21 = vld [vmem:[%s0] sm:$0xff]
    %v22 = vld [vmem:[%s0 + $0x8] sm:$0xff]
    %v25 = vcombine.high %v21, %v21
    %v26 = vcombine.high %v22, %v22
    %vm29 = vcmask 1043456
    %v30 = vsel %vm29, %v21, 0.0
    %v31 = vsel %vm29, %v25, 0.0
    %v32 = vadd.f32 %v30, %v31
    %33 = vadd.xlane.f32.xlu0 %v32
    %v34 = vpop.xlane.xlu0 %33
    %v35 = vsel %vm29, %v22, 0.0
    %v36 = vsel %vm29, %v26, 0.0
    %v37 = vadd.f32 %v35, %v36
    %38 = vadd.xlane.f32.xlu0 %v37
    %v39 = vpop.xlane.xlu0 %38
    %v40 = vrcp.pop 256.0
    %v41 = vmul.f32 %v34, %v40
    %v42 = vmul.f32 %v39, %v40
    %v43 = vld [vmem:[%s1] sm:$0xf]
    %v44 = vld [vmem:[%s2] sm:$0x1]
    %v46 = vlaneseq
    %v47 = vshrl.u32 %v46, 7
    %v48 = vsub.s32 0, %v47
    %v49 = vrot.slane %v44, %v48
    %v53 = vlaneseq
    %v54 = vand.u32 %v53, 127
    %v55 = vlaneseq
    %v56 = vshrl.u32 %v55, 7
    %v57 = vsub.s32 %v54, %v56
    %v58 = vrot.slane %v41, %v57
    %v59 = vlaneseq
    %v60 = vshrl.u32 %v59, 7
    %v61 = vsub.s32 %v54, %v60
    %v62 = vrot.slane %v42, %v61
    %vm63 = vcmask 1041409
    %v64 = vsel %vm63, %v62, %v58
    %vm65 = vcmask 31744
    %v66 = vsel %vm65, %v64, 0
    %v69 = vsel %vm29, %v43, 0
    %71 = vmatprep.subr.mxu0 0.0
    %72 = vmatpush1.msra.mxu0 0.0
    %73 = vmatprep.subr.mxu0 0.0
    %74 = vmatpush1.msra.mxu0 0.0
    %75 = vmatprep.subr.mxu0 0.0
    %76 = vmatpush1.msra.mxu0 0.0
    %77 = vmatprep.subr.mxu0 0.0
    %78 = vmatpush1.msra.mxu0 0.0
    %79 = vmatprep.subr.mxu0 0.0
    %80 = vmatpush1.msra.mxu0 0.0
    %81 = vmatprep.subr.mxu0 0.0
    %82 = vmatpush1.msra.mxu0 0.0
    %83 = vmatprep.subr.mxu0 0.0
    %84 = vmatpush1.msra.mxu0 0.0
    %85 = vmatprep.subr.mxu0 0.0
    %86 = vmatpush1.msra.mxu0 0.0
    %87 = vmatprep.subr.mxu0 0.0
    %88 = vmatpush1.msra.mxu0 0.0
    %89 = vmatprep.subr.mxu0 0.0
    %90 = vmatpush1.msra.mxu0 0.0
    %91 = vmatprep.subr.mxu0 0.0
    %92 = vmatpush1.msra.mxu0 0.0
    %93 = vmatprep.subr.mxu0 0.0
    %94 = vmatpush1.msra.mxu0 0.0
    %95 = vmatprep.subr.mxu0 0.0
    %96 = vmatpush1.msra.mxu0 0.0
    %97 = vmatprep.subr.mxu0 0.0
    %98 = vmatpush1.msra.mxu0 0.0
    %99 = vmatprep.subr.mxu0 0.0
    %100 = vmatpush1.msra.mxu0 0.0
    %101 = vmatprep.subr.mxu0 0.0
    %102 = vmatpush1.msra.mxu0 %v69
    %103 = vmatprep.subr.mxu0 0.0
    %104 = vmatpush2.msra.mxu0 0.0
    %105 = vmatprep.subr.mxu0 0.0
    %106 = vmatpush2.msra.mxu0 0.0
    %107 = vmatprep.subr.mxu0 0.0
    %108 = vmatpush2.msra.mxu0 0.0
    %109 = vmatprep.subr.mxu0 0.0
    %110 = vmatpush2.msra.mxu0 0.0
    %111 = vmatprep.subr.mxu0 0.0
    %112 = vmatpush2.msra.mxu0 0.0
    %113 = vmatprep.subr.mxu0 0.0
    %114 = vmatpush2.msra.mxu0 0.0
    %115 = vmatprep.subr.mxu0 0.0
    %116 = vmatpush2.msra.mxu0 0.0
    %117 = vmatprep.subr.mxu0 0.0
    %118 = vmatpush2.msra.mxu0 0.0
    %119 = vmatprep.subr.mxu0 0.0
    %120 = vmatpush2.msra.mxu0 0.0
    %121 = vmatprep.subr.mxu0 0.0
    %122 = vmatpush2.msra.mxu0 0.0
    %123 = vmatprep.subr.mxu0 0.0
    %124 = vmatpush2.msra.mxu0 0.0
    %125 = vmatprep.subr.mxu0 0.0
    %126 = vmatpush2.msra.mxu0 0.0
    %127 = vmatprep.subr.mxu0 0.0
    %128 = vmatpush2.msra.mxu0 0.0
    %129 = vmatprep.subr.mxu0 0.0
    %130 = vmatpush2.msra.mxu0 0.0
    %131 = vmatprep.subr.mxu0 0.0
    %132 = vmatpush2.msra.mxu0 0.0
    %133 = vmatprep.subr.mxu0 0.0
    %134 = vmatpush2.msra.mxu0 0.0
    %135 = vmatprep.mubr.f32.mxu0 0.0
    %136 = vmatmul.mubr.f32.gmra.mxu0 %v66
    %v137 = vpop.f32.mrf.mxu0
    %v138 = vadd.f32 %v49, %v137
    %v139 = vpop.f32.mrf.mxu0
    %140 = vdwg.mxu0
    %v141 = vmax.f32 %v138, 0.0
    %v142 = vld [vmem:[%s3] sm:$0xff]
    %v143 = vld [vmem:[%s3 + $0x8] sm:$0xff]
    %v144 = vld [vmem:[%s3 + $0x10] sm:$0xff]
    %v145 = vld [vmem:[%s3 + $0x18] sm:$0xff]
    %v146 = vld [vmem:[%s3 + $0x20] sm:$0xff]
    %v147 = vld [vmem:[%s3 + $0x28] sm:$0xff]
    %v148 = vld [vmem:[%s3 + $0x30] sm:$0xff]
    %v149 = vld [vmem:[%s3 + $0x38] sm:$0xff]
    %v150 = vld [vmem:[%s3 + $0x40] sm:$0xff]
    %v151 = vld [vmem:[%s4] sm:$0x1]
    %v153 = vlaneseq
    %v154 = vshrl.u32 %v153, 7
    %v155 = vsub.s32 0, %v154
    %v156 = vrot.slane %v151, %v155
    %vm158 = vcmask 588800
    %v160 = vsel %vm158, %v141, 0
    %162 = vmatprep.subr.mxu0 0.0
    %163 = vmatpush1.msra.mxu0 0.0
    %164 = vmatprep.subr.mxu0 0.0
    %165 = vmatpush1.msra.mxu0 0.0
    %166 = vmatprep.subr.mxu0 0.0
    %167 = vmatpush1.msra.mxu0 0.0
    %168 = vmatprep.subr.mxu0 0.0
    %169 = vmatpush1.msra.mxu0 0.0
    %170 = vmatprep.subr.mxu0 0.0
    %171 = vmatpush1.msra.mxu0 0.0
    %172 = vmatprep.subr.mxu0 0.0
    %173 = vmatpush1.msra.mxu0 0.0
    %174 = vmatprep.subr.mxu0 0.0
    %175 = vmatpush1.msra.mxu0 0.0
    %176 = vmatprep.subr.mxu0 0.0
    %177 = vmatpush1.msra.mxu0 %v150
    %178 = vmatprep.subr.mxu0 0.0
    %179 = vmatpush1.msra.mxu0 %v149
    %180 = vmatprep.subr.mxu0 0.0
    %181 = vmatpush1.msra.mxu0 %v148
    %182 = vmatprep.subr.mxu0 0.0
    %183 = vmatpush1.msra.mxu0 %v147
    %184 = vmatprep.subr.mxu0 0.0
    %185 = vmatpush1.msra.mxu0 %v146
    %186 = vmatprep.subr.mxu0 0.0
    %187 = vmatpush1.msra.mxu0 %v145
    %188 = vmatprep.subr.mxu0 0.0
    %189 = vmatpush1.msra.mxu0 %v144
    %190 = vmatprep.subr.mxu0 0.0
    %191 = vmatpush1.msra.mxu0 %v143
    %192 = vmatprep.subr.mxu0 0.0
    %193 = vmatpush1.msra.mxu0 %v142
    %194 = vmatprep.subr.mxu0 0.0
    %195 = vmatpush2.msra.mxu0 0.0
    %196 = vmatprep.subr.mxu0 0.0
    %197 = vmatpush2.msra.mxu0 0.0
    %198 = vmatprep.subr.mxu0 0.0
    %199 = vmatpush2.msra.mxu0 0.0
    %200 = vmatprep.subr.mxu0 0.0
    %201 = vmatpush2.msra.mxu0 0.0
    %202 = vmatprep.subr.mxu0 0.0
    %203 = vmatpush2.msra.mxu0 0.0
    %204 = vmatprep.subr.mxu0 0.0
    %205 = vmatpush2.msra.mxu0 0.0
    %206 = vmatprep.subr.mxu0 0.0
    %207 = vmatpush2.msra.mxu0 0.0
    %208 = vmatprep.subr.mxu0 0.0
    %209 = vmatpush2.msra.mxu0 0.0
    %210 = vmatprep.subr.mxu0 0.0
    %211 = vmatpush2.msra.mxu0 0.0
    %212 = vmatprep.subr.mxu0 0.0
    %213 = vmatpush2.msra.mxu0 0.0
    %214 = vmatprep.subr.mxu0 0.0
    %215 = vmatpush2.msra.mxu0 0.0
    %216 = vmatprep.subr.mxu0 0.0
    %217 = vmatpush2.msra.mxu0 0.0
    %218 = vmatprep.subr.mxu0 0.0
    %219 = vmatpush2.msra.mxu0 0.0
    %220 = vmatprep.subr.mxu0 0.0
    %221 = vmatpush2.msra.mxu0 0.0
    %222 = vmatprep.subr.mxu0 0.0
    %223 = vmatpush2.msra.mxu0 0.0
    %224 = vmatprep.subr.mxu0 0.0
    %225 = vmatpush2.msra.mxu0 0.0
    %226 = vmatprep.mubr.f32.mxu0 0.0
    %227 = vmatmul.mubr.f32.gmra.mxu0 %v160
    %v228 = vpop.f32.mrf.mxu0
    %v229 = vadd.f32 %v156, %v228
    %v230 = vpop.f32.mrf.mxu0
    %231 = vdwg.mxu0
    %v232 = vadd.f32 %v229, 3.0
    %v233 = vmax.f32 %v232, 0.0
    %v234 = vmin.f32 %v233, 6.0
    %v235 = vmul.f32 %v234, 0.16666667
    %v236 = vlaneseq
    %v237 = vshrl.u32 %v236, 7
    %v238 = vsub.s32 0, %v237
    %v239 = vrot.slane %v235, %v238
    %241 = vbcast.lane.b32.xlu0 %v239, 256
    %v242 = vpop.permute.xlu0 %241
    %v243 = vlaneseq
    %v244 = vshrl.u32 %v243, 7
    %v245 = vsub.s32 1, %v244
    %v246 = vrot.slane %v235, %v245
    %248 = vbcast.lane.b32.xlu0 %v246, 256
    %v249 = vpop.permute.xlu0 %248
    %v253 = vunpack.c.l.s4 839922192
    %v254 = vunpack.c.0.s8 %v253
    %v255 = vlaneseq
    %v256 = vshrl.u32 %v255, 7
    %v257 = vsub.s32 %v254, %v256
    %v258 = vrot.slane %v242, %v257
    %v260 = vunpack.c.l.s4 839922192
    %v261 = vunpack.c.0.s8 %v260
    %v262 = vlaneseq
    %v263 = vshrl.u32 %v262, 7
    %v264 = vsub.s32 %v261, %v263
    %v265 = vrot.slane %v249, %v264
    %v268 = vmul.f32 %v21, %v258
    %v269 = vmul.f32 %v22, %v265
    %270 = vst [vmem:[#allocation2] sm:$0xff] %v268
    %271 = vst [vmem:[#allocation2 + $0x8] sm:$0xff] %v269
    // Predicated region
    $region22: #{tpu_custom_call.1} parent=1 // pred_check
      _
    $region23: #{tpu_custom_call.1} parent=1 // pred_check_branch
      %273 = sbr.rel (0) target = $region25
    $region24: #{tpu_custom_call.1} parent=1 // pred_region
      %s275 = ssub.s32 256, 256
      %276 = vsyncadd [#allocation3], %s275
      %s277 = sshll.u32 [#allocation2], 4
      %s278 = int_to_ptr.vmem [resolvable:$true] %s277
      %283 = dma.vmem_to_hbm [thread:$0]  %s278, 256, %s5, [#allocation3], 128, 128, 8
    $region25: #{tpu_custom_call.1} parent=1 // pred_fallthru
      _
    // Predicated region
    $region26: #{tpu_custom_call.1} parent=1 // pred_check
      _
    $region27: #{tpu_custom_call.1} parent=1 // pred_check_branch
      %285 = sbr.rel (0) target = $region29
    $region28: #{tpu_custom_call.1} parent=1 // pred_region
      %286 = dma.done [#allocation3], 256
    $region29: #{tpu_custom_call.1} parent=1 // pred_fallthru
      _
    %287 = vsyncpa [#allocation3], 1

</llo_original>
